<compile_context>
chip_gen: v7x
topology: tpu7x:2x2x1
jax: 0.10.0
libtpu: 0.0.40
codegen_flags: <defaults>
</compile_context>

<pallas_src>
import functools

import jax
import jax.numpy as jnp
from jax.experimental import pallas as pl
from jax.experimental.pallas import tpu as pltpu


def _round_up(x, m):
    return ((x + m - 1) // m) * m


def _choose_tiles(n):
    """Return (n_pad, tm, tk): row tile (parallel axis) and column/reduction tile."""
    if n <= 1024:
        # Small graphs: one lane-aligned block per axis (still gridded, grid=(1,1)).
        n_pad = _round_up(n, 128)
        return n_pad, n_pad, n_pad
    # Large graphs: bf16 A_hat tile = 256x512x2B = 256 KiB, double-buffered 512 KiB.
    tm, tk = 256, 512
    n_pad = _round_up(n, tk)  # tk is a multiple of tm, so n_pad divides both
    return n_pad, tm, tk


def _layer1_kernel(aw_ref, x_ref, w1_ref, b1_ref, w2_ref, y2_ref, acc_ref):
    """acc[i] += A_hat[i,k] @ x[k]; at last k apply Linear1 + ReLU + Linear2."""
    k = pl.program_id(1)

    @pl.when(k == 0)
    def _():
        acc_ref[...] = jnp.zeros_like(acc_ref)

    acc_ref[...] += jnp.dot(aw_ref[...], x_ref[...],
                            preferred_element_type=jnp.float32)

    @pl.when(k == pl.num_programs(1) - 1)
    def _():
        z1 = jnp.dot(acc_ref[...], w1_ref[...],
                     preferred_element_type=jnp.float32) + b1_ref[...]
        z1 = jnp.maximum(z1, 0.0)
        # Linear commutes with propagate: pre-apply W2 so layer2 streams width-2.
        y2 = jnp.dot(z1, w2_ref[...], preferred_element_type=jnp.float32)
        y2_ref[...] = y2.astype(y2_ref.dtype)


def _layer2_kernel(aw_ref, y2_ref, b2_ref, o_ref, acc_ref):
    """out[i] = sum_k A_hat[i,k] @ y2[k] + b2."""
    k = pl.program_id(1)

    @pl.when(k == 0)
    def _():
        acc_ref[...] = jnp.zeros_like(acc_ref)

    acc_ref[...] += jnp.dot(aw_ref[...], y2_ref[...],
                            preferred_element_type=jnp.float32)

    @pl.when(k == pl.num_programs(1) - 1)
    def _():
        o_ref[...] = (acc_ref[...] + b2_ref[...]).astype(o_ref.dtype)


@functools.partial(jax.jit)
def gcn_net_forward(aw, sw, features, w1, b1, w2, b2):
    """Net forward: layer2(g, relu(layer1(g, features)))."""
    n, f = features.shape
    hidden = w1.shape[1]
    out_feats = w2.shape[1]

    # Fold the self term into the adjacency diagonal: propagate(h) = A_hat @ h.
    a_hat = aw + jnp.diag(sw[:, 0])

    n_pad, tm, tk = _choose_tiles(n)
    pad_n = n_pad - n
    # Zero padding is exact: padded rows/columns of A_hat are zero, so padded
    # nodes never contribute to real nodes; padded outputs are sliced off.
    a_hat = jnp.pad(a_hat, ((0, pad_n), (0, pad_n))).astype(jnp.bfloat16)
    x = jnp.pad(features, ((0, pad_n), (0, 0))).astype(jnp.bfloat16)

    grid = (n_pad // tm, n_pad // tk)
    cparams = pltpu.CompilerParams(
        dimension_semantics=("parallel", "arbitrary"),
        vmem_limit_bytes=32 * 1024 * 1024,
    )

    # ---- pass 1: y2 = relu(A_hat @ x @ W1 + b1) @ W2 ----------------------
    y2 = pl.pallas_call(
        _layer1_kernel,
        out_shape=jax.ShapeDtypeStruct((n_pad, out_feats), jnp.bfloat16),
        grid_spec=pltpu.PrefetchScalarGridSpec(
            num_scalar_prefetch=0,
            grid=grid,
            in_specs=[
                pl.BlockSpec((tm, tk), lambda i, k: (i, k)),          # A_hat tile
                pl.BlockSpec((tk, f), lambda i, k: (k, 0)),           # x rows (K)
                pl.BlockSpec((f, hidden), lambda i, k: (0, 0)),       # W1
                pl.BlockSpec((1, hidden), lambda i, k: (0, 0)),       # b1
                pl.BlockSpec((hidden, out_feats), lambda i, k: (0, 0)),  # W2
            ],
            out_specs=pl.BlockSpec((tm, out_feats), lambda i, k: (i, 0)),
            scratch_shapes=[pltpu.VMEM((tm, f), jnp.float32)],
        ),
        compiler_params=cparams,
    )(a_hat, x, w1, b1, w2)

    # ---- pass 2: out = A_hat @ y2 + b2 -------------------------------------
    out = pl.pallas_call(
        _layer2_kernel,
        out_shape=jax.ShapeDtypeStruct((n_pad, out_feats), jnp.float32),
        grid_spec=pltpu.PrefetchScalarGridSpec(
            num_scalar_prefetch=0,
            grid=grid,
            in_specs=[
                pl.BlockSpec((tm, tk), lambda i, k: (i, k)),          # A_hat tile
                pl.BlockSpec((tk, out_feats), lambda i, k: (k, 0)),   # y2 rows (K)
                pl.BlockSpec((1, out_feats), lambda i, k: (0, 0)),    # b2
            ],
            out_specs=pl.BlockSpec((tm, out_feats), lambda i, k: (i, 0)),
            scratch_shapes=[pltpu.VMEM((tm, out_feats), jnp.float32)],
        ),
        compiler_params=cparams,
    )(a_hat, y2, b2)

    return out[:n]


def _reference(aw, sw, features, w1, b1, w2, b2):
    """Plain-JAX reference mirroring the kernel's math and dtype strategy."""
    a_hat = (aw + jnp.diag(sw[:, 0])).astype(jnp.bfloat16)
    x = features.astype(jnp.bfloat16)
    h1 = jnp.dot(a_hat, x, preferred_element_type=jnp.float32)
    z1 = jnp.maximum(jnp.dot(h1, w1, preferred_element_type=jnp.float32) + b1, 0.0)
    y2 = jnp.dot(z1, w2, preferred_element_type=jnp.float32).astype(jnp.bfloat16)
    return jnp.dot(a_hat, y2, preferred_element_type=jnp.float32) + b2


if __name__ == "__main__":
    key = jax.random.PRNGKey(0)
    k_adj, k_ew, k_sw, k_x, k_w1, k_b1, k_w2, k_b2 = jax.random.split(key, 8)

    N = 8          # number of graph nodes
    IN_FEATS = 8   # `feature` argument of Net.__init__
    HIDDEN = 16
    OUT = 2

    # Deterministic synthetic graph: dense 0/1 adjacency + per-edge weights.
    adj = (jax.random.uniform(k_adj, (N, N)) > 0.5).astype(jnp.float32)
    edge_w = jax.random.normal(k_ew, (N, N), dtype=jnp.float32)
    aw = adj * (edge_w + 1.0)                       # [N, N]: (weight + 1) where edge exists
    self_w = jax.random.normal(k_sw, (N, 1), dtype=jnp.float32)
    sw = self_w + 1.0                               # [N, 1]: self_weight + 1

    features = jax.random.normal(k_x, (N, IN_FEATS), dtype=jnp.float32)

    # Deterministic linear parameters (nn.Linear: y = x @ W^T + b); stored pre-transposed.
    w1 = jax.random.normal(k_w1, (IN_FEATS, HIDDEN), dtype=jnp.float32) * 0.1
    b1 = jax.random.normal(k_b1, (1, HIDDEN), dtype=jnp.float32) * 0.1
    w2 = jax.random.normal(k_w2, (HIDDEN, OUT), dtype=jnp.float32) * 0.1
    b2 = jax.random.normal(k_b2, (1, OUT), dtype=jnp.float32) * 0.1

    out = gcn_net_forward(aw, sw, features, w1, b1, w2, b2)
    out = jax.block_until_ready(out)

    ref = _reference(aw, sw, features, w1, b1, w2, b2)
    assert out.shape == (N, OUT), out.shape
    assert jnp.allclose(out, ref, atol=1e-3, rtol=1e-3), "mismatch vs reference"

    print("KERNEL_OK")
</pallas_src>

<mosaic_0001>
module attributes {stable_mosaic.version = 11 : i64} {
  func.func @_layer1_kernel(%arg0: i32, %arg1: i32, %arg2: memref<128x128xbf16, #tpu.memory_space<vmem>>, %arg3: memref<128x8xbf16, #tpu.memory_space<vmem>>, %arg4: memref<8x16xf32, #tpu.memory_space<vmem>>, %arg5: memref<1x16xf32, #tpu.memory_space<vmem>>, %arg6: memref<16x2xf32, #tpu.memory_space<vmem>>, %arg7: memref<128x2xbf16, #tpu.memory_space<vmem>>, %arg8: memref<128x8xf32, #tpu.memory_space<vmem>>) attributes {dimension_semantics = [#tpu.dimension_semantics<parallel>, #tpu.dimension_semantics<arbitrary>], iteration_bounds = array<i64: 1, 1>, scalar_prefetch = 0 : i64, scratch_operands = 1 : i64, tpu.core_type = #tpu.core_type<tc>, window_params = [{transform_indices = @transform_0, window_bounds = array<i64: 128, 128>}, {transform_indices = @transform_1, window_bounds = array<i64: 128, 8>}, {pipeline_mode = #tpu.pipeline_mode<synchronous>, transform_indices = @transform_2, window_bounds = array<i64: 8, 16>}, {pipeline_mode = #tpu.pipeline_mode<synchronous>, transform_indices = @transform_3, window_bounds = array<i64: 1, 16>}, {pipeline_mode = #tpu.pipeline_mode<synchronous>, transform_indices = @transform_4, window_bounds = array<i64: 16, 2>}, {transform_indices = @transform_5, window_bounds = array<i64: 128, 2>}]} {
    %c0_i32 = arith.constant 0 : i32
    %0 = arith.cmpi eq, %arg1, %c0_i32 : i32
    %1 = arith.extui %0 : i1 to i32
    %c0_i32_0 = arith.constant 0 : i32
    %2 = arith.cmpi ne, %1, %c0_i32_0 : i32
    scf.if %2 {
      %cst_10 = arith.constant 0.000000e+00 : f32
      %12 = vector.broadcast %cst_10 : f32 to vector<128x8xf32>
      %c0_11 = arith.constant 0 : index
      %c0_12 = arith.constant 0 : index
      %13 = vector.load %arg8[%c0_11, %c0_12] : memref<128x8xf32, #tpu.memory_space<vmem>>, vector<128x8xf32>
      tpu.vector_store %arg8[%c0_11, %c0_12], %12 {strides = array<i32>} : memref<128x8xf32, #tpu.memory_space<vmem>>, vector<128x8xf32>,
    } else {
    }
    %c0 = arith.constant 0 : index
    %c0_1 = arith.constant 0 : index
    %3 = vector.load %arg8[%c0, %c0_1] : memref<128x8xf32, #tpu.memory_space<vmem>>, vector<128x8xf32>
    %c0_2 = arith.constant 0 : index
    %c0_3 = arith.constant 0 : index
    %4 = vector.load %arg2[%c0_2, %c0_3] : memref<128x128xbf16, #tpu.memory_space<vmem>>, vector<128x128xbf16>
    %c0_4 = arith.constant 0 : index
    %c0_5 = arith.constant 0 : index
    %5 = vector.load %arg3[%c0_4, %c0_5] : memref<128x8xbf16, #tpu.memory_space<vmem>>, vector<128x8xbf16>
    %cst = arith.constant dense<0.000000e+00> : vector<128x8xf32>
    %6 = tpu.matmul %4, %5, %cst {dimension_numbers = #tpu.dot_dimension_numbers<[1], [0], [0], [1], [0, 0, 1, 1], [], []>} : vector<128x128xbf16>, vector<128x8xbf16>, vector<128x8xf32> -> vector<128x8xf32>
    %7 = arith.addf %3, %6 : vector<128x8xf32>
    %c0_6 = arith.constant 0 : index
    %c0_7 = arith.constant 0 : index
    %8 = vector.load %arg8[%c0_6, %c0_7] : memref<128x8xf32, #tpu.memory_space<vmem>>, vector<128x8xf32>
    tpu.vector_store %arg8[%c0_6, %c0_7], %7 {strides = array<i32>} : memref<128x8xf32, #tpu.memory_space<vmem>>, vector<128x8xf32>,
    %c0_i32_8 = arith.constant 0 : i32
    %9 = arith.cmpi eq, %arg1, %c0_i32_8 : i32
    %10 = arith.extui %9 : i1 to i32
    %c0_i32_9 = arith.constant 0 : i32
    %11 = arith.cmpi ne, %10, %c0_i32_9 : i32
    scf.if %11 {
      %c0_10 = arith.constant 0 : index
      %c0_11 = arith.constant 0 : index
      %12 = vector.load %arg8[%c0_10, %c0_11] : memref<128x8xf32, #tpu.memory_space<vmem>>, vector<128x8xf32>
      %c0_12 = arith.constant 0 : index
      %c0_13 = arith.constant 0 : index
      %13 = vector.load %arg4[%c0_12, %c0_13] : memref<8x16xf32, #tpu.memory_space<vmem>>, vector<8x16xf32>
      %cst_14 = arith.constant dense<0.000000e+00> : vector<128x16xf32>
      %14 = tpu.matmul %12, %13, %cst_14 {dimension_numbers = #tpu.dot_dimension_numbers<[1], [0], [0], [1], [0, 0, 1, 1], [], []>} : vector<128x8xf32>, vector<8x16xf32>, vector<128x16xf32> -> vector<128x16xf32>
      %c0_15 = arith.constant 0 : index
      %c0_16 = arith.constant 0 : index
      %15 = vector.load %arg5[%c0_15, %c0_16] : memref<1x16xf32, #tpu.memory_space<vmem>>, vector<1x16xf32>
      %16 = vector.broadcast %15 : vector<1x16xf32> to vector<128x16xf32>
      %17 = arith.addf %14, %16 : vector<128x16xf32>
      %cst_17 = arith.constant 0.000000e+00 : f32
      %18 = vector.broadcast %cst_17 : f32 to vector<128x16xf32>
      %19 = arith.maximumf %17, %18 : vector<128x16xf32>
      %c0_18 = arith.constant 0 : index
      %c0_19 = arith.constant 0 : index
      %20 = vector.load %arg6[%c0_18, %c0_19] : memref<16x2xf32, #tpu.memory_space<vmem>>, vector<16x2xf32>
      %cst_20 = arith.constant dense<0.000000e+00> : vector<128x2xf32>
      %21 = tpu.matmul %19, %20, %cst_20 {dimension_numbers = #tpu.dot_dimension_numbers<[1], [0], [0], [1], [0, 0, 1, 1], [], []>} : vector<128x16xf32>, vector<16x2xf32>, vector<128x2xf32> -> vector<128x2xf32>
      %22 = arith.truncf %21 : vector<128x2xf32> to vector<128x2xbf16>
      %c0_21 = arith.constant 0 : index
      %c0_22 = arith.constant 0 : index
      %23 = vector.load %arg7[%c0_21, %c0_22] : memref<128x2xbf16, #tpu.memory_space<vmem>>, vector<128x2xbf16>
      tpu.vector_store %arg7[%c0_21, %c0_22], %22 {strides = array<i32>} : memref<128x2xbf16, #tpu.memory_space<vmem>>, vector<128x2xbf16>,
    } else {
    }
    return
  }
  func.func @transform_0(%arg0: i32, %arg1: i32) -> (i32, i32) {
    %c0_i32 = arith.constant 0 : i32
    return %arg0, %arg1 : i32, i32
  }
  func.func @transform_1(%arg0: i32, %arg1: i32) -> (i32, i32) {
    %c0_i32 = arith.constant 0 : i32
    %c0_i32_0 = arith.constant 0 : i32
    return %arg1, %c0_i32 : i32, i32
  }
  func.func @transform_2(%arg0: i32, %arg1: i32) -> (i32, i32) {
    %c0_i32 = arith.constant 0 : i32
    %c0_i32_0 = arith.constant 0 : i32
    %c0_i32_1 = arith.constant 0 : i32
    return %c0_i32, %c0_i32_0 : i32, i32
  }
  func.func @transform_3(%arg0: i32, %arg1: i32) -> (i32, i32) {
    %c0_i32 = arith.constant 0 : i32
    %c0_i32_0 = arith.constant 0 : i32
    %c0_i32_1 = arith.constant 0 : i32
    return %c0_i32, %c0_i32_0 : i32, i32
  }
  func.func @transform_4(%arg0: i32, %arg1: i32) -> (i32, i32) {
    %c0_i32 = arith.constant 0 : i32
    %c0_i32_0 = arith.constant 0 : i32
    %c0_i32_1 = arith.constant 0 : i32
    return %c0_i32, %c0_i32_0 : i32, i32
  }
  func.func @transform_5(%arg0: i32, %arg1: i32) -> (i32, i32) {
    %c0_i32 = arith.constant 0 : i32
    %c0_i32_0 = arith.constant 0 : i32
    return %arg0, %c0_i32 : i32, i32
  }
}

module attributes {stable_mosaic.version = 11 : i64} {
  func.func @_layer2_kernel(%arg0: i32, %arg1: i32, %arg2: memref<128x128xbf16, #tpu.memory_space<vmem>>, %arg3: memref<128x2xbf16, #tpu.memory_space<vmem>>, %arg4: memref<1x2xf32, #tpu.memory_space<vmem>>, %arg5: memref<128x2xf32, #tpu.memory_space<vmem>>, %arg6: memref<128x2xf32, #tpu.memory_space<vmem>>) attributes {dimension_semantics = [#tpu.dimension_semantics<parallel>, #tpu.dimension_semantics<arbitrary>], iteration_bounds = array<i64: 1, 1>, scalar_prefetch = 0 : i64, scratch_operands = 1 : i64, tpu.core_type = #tpu.core_type<tc>, window_params = [{transform_indices = @transform_0, window_bounds = array<i64: 128, 128>}, {transform_indices = @transform_1, window_bounds = array<i64: 128, 2>}, {pipeline_mode = #tpu.pipeline_mode<synchronous>, transform_indices = @transform_2, window_bounds = array<i64: 1, 2>}, {transform_indices = @transform_3, window_bounds = array<i64: 128, 2>}]} {
    %c0_i32 = arith.constant 0 : i32
    %0 = arith.cmpi eq, %arg1, %c0_i32 : i32
    %1 = arith.extui %0 : i1 to i32
    %c0_i32_0 = arith.constant 0 : i32
    %2 = arith.cmpi ne, %1, %c0_i32_0 : i32
    scf.if %2 {
      %cst_10 = arith.constant 0.000000e+00 : f32
      %12 = vector.broadcast %cst_10 : f32 to vector<128x2xf32>
      %c0_11 = arith.constant 0 : index
      %c0_12 = arith.constant 0 : index
      %13 = vector.load %arg6[%c0_11, %c0_12] : memref<128x2xf32, #tpu.memory_space<vmem>>, vector<128x2xf32>
      tpu.vector_store %arg6[%c0_11, %c0_12], %12 {strides = array<i32>} : memref<128x2xf32, #tpu.memory_space<vmem>>, vector<128x2xf32>,
    } else {
    }
    %c0 = arith.constant 0 : index
    %c0_1 = arith.constant 0 : index
    %3 = vector.load %arg6[%c0, %c0_1] : memref<128x2xf32, #tpu.memory_space<vmem>>, vector<128x2xf32>
    %c0_2 = arith.constant 0 : index
    %c0_3 = arith.constant 0 : index
    %4 = vector.load %arg2[%c0_2, %c0_3] : memref<128x128xbf16, #tpu.memory_space<vmem>>, vector<128x128xbf16>
    %c0_4 = arith.constant 0 : index
    %c0_5 = arith.constant 0 : index
    %5 = vector.load %arg3[%c0_4, %c0_5] : memref<128x2xbf16, #tpu.memory_space<vmem>>, vector<128x2xbf16>
    %cst = arith.constant dense<0.000000e+00> : vector<128x2xf32>
    %6 = tpu.matmul %4, %5, %cst {dimension_numbers = #tpu.dot_dimension_numbers<[1], [0], [0], [1], [0, 0, 1, 1], [], []>} : vector<128x128xbf16>, vector<128x2xbf16>, vector<128x2xf32> -> vector<128x2xf32>
    %7 = arith.addf %3, %6 : vector<128x2xf32>
    %c0_6 = arith.constant 0 : index
    %c0_7 = arith.constant 0 : index
    %8 = vector.load %arg6[%c0_6, %c0_7] : memref<128x2xf32, #tpu.memory_space<vmem>>, vector<128x2xf32>
    tpu.vector_store %arg6[%c0_6, %c0_7], %7 {strides = array<i32>} : memref<128x2xf32, #tpu.memory_space<vmem>>, vector<128x2xf32>,
    %c0_i32_8 = arith.constant 0 : i32
    %9 = arith.cmpi eq, %arg1, %c0_i32_8 : i32
    %10 = arith.extui %9 : i1 to i32
    %c0_i32_9 = arith.constant 0 : i32
    %11 = arith.cmpi ne, %10, %c0_i32_9 : i32
    scf.if %11 {
      %c0_10 = arith.constant 0 : index
      %c0_11 = arith.constant 0 : index
      %12 = vector.load %arg6[%c0_10, %c0_11] : memref<128x2xf32, #tpu.memory_space<vmem>>, vector<128x2xf32>
      %c0_12 = arith.constant 0 : index
      %c0_13 = arith.constant 0 : index
      %13 = vector.load %arg4[%c0_12, %c0_13] : memref<1x2xf32, #tpu.memory_space<vmem>>, vector<1x2xf32>
      %14 = vector.broadcast %13 : vector<1x2xf32> to vector<128x2xf32>
      %15 = arith.addf %12, %14 : vector<128x2xf32>
      %c0_14 = arith.constant 0 : index
      %c0_15 = arith.constant 0 : index
      %16 = vector.load %arg5[%c0_14, %c0_15] : memref<128x2xf32, #tpu.memory_space<vmem>>, vector<128x2xf32>
      tpu.vector_store %arg5[%c0_14, %c0_15], %15 {strides = array<i32>} : memref<128x2xf32, #tpu.memory_space<vmem>>, vector<128x2xf32>,
    } else {
    }
    return
  }
  func.func @transform_0(%arg0: i32, %arg1: i32) -> (i32, i32) {
    %c0_i32 = arith.constant 0 : i32
    return %arg0, %arg1 : i32, i32
  }
  func.func @transform_1(%arg0: i32, %arg1: i32) -> (i32, i32) {
    %c0_i32 = arith.constant 0 : i32
    %c0_i32_0 = arith.constant 0 : i32
    return %arg1, %c0_i32 : i32, i32
  }
  func.func @transform_2(%arg0: i32, %arg1: i32) -> (i32, i32) {
    %c0_i32 = arith.constant 0 : i32
    %c0_i32_0 = arith.constant 0 : i32
    %c0_i32_1 = arith.constant 0 : i32
    return %c0_i32, %c0_i32_0 : i32, i32
  }
  func.func @transform_3(%arg0: i32, %arg1: i32) -> (i32, i32) {
    %c0_i32 = arith.constant 0 : i32
    %c0_i32_0 = arith.constant 0 : i32
    return %arg0, %c0_i32 : i32, i32
  }
}

</mosaic_0001>

<llo_original>
// kernel: gcn_net_forward.3
$region0: #{gcn_net_forward.3}
  #allocation0 [shape = 'u32[]', space=smem, size = 0x4, offset = 0x4, fixed_abs, tag = 'smem constant byte address 0x4 - core index']
  #allocation1 [shape = 'u32[144,128]{1,0:T(1,128)}', space=vmem, size = 0x12000, scoped, tag = 'internal scratch']
  #allocation2 [shape = 'f32[128,2]{1,0:T(8,128)}', space=vmem, size = 0x10000, scoped, tag = 'scratch operand']
  %s0 = inlined_call_operand.vmem [shape: bf16[128,128], index: 0, kind: input, shape index: {}]
  %s1 = inlined_call_operand.vmem [shape: bf16[128,2], index: 1, kind: input, shape index: {}]
  %s2 = inlined_call_operand.vmem [shape: f32[1,2], index: 2, kind: input, shape index: {}]
  %s3 = inlined_call_operand.vmem [shape: f32[128,2], index: 3, kind: output, shape index: {}]
  %s4 = sld [smem:[#allocation0]]
  $region30: #{gcn_net_forward.3} parent=0
    _
  %s6 = ssub.s32 1, %s4
  %s7 = scalar_select 0, %s6, %s4
  // Predicated region
  $region2: #{gcn_net_forward.3} parent=0 // pred_check
    _
  $region3: #{gcn_net_forward.3} parent=0 // pred_check_branch
    %9 = sbr.rel (0) target = $region5
  $region4: #{gcn_net_forward.3} parent=0 // pred_region
    _
  $region5: #{gcn_net_forward.3} parent=0 // pred_fallthru
    _
  // Predicated region
  $region6: #{gcn_net_forward.3} parent=0 // pred_check
    _
  $region7: #{gcn_net_forward.3} parent=0 // pred_check_branch
    %11 = sbr.rel (0) target = $region9
  $region8: #{gcn_net_forward.3} parent=0 // pred_region
    _
  $region9: #{gcn_net_forward.3} parent=0 // pred_fallthru
    _
  // Predicated region
  $region10: #{gcn_net_forward.3} parent=0 // pred_check
    _
  $region11: #{gcn_net_forward.3} parent=0 // pred_check_branch
    %13 = sbr.rel (0) target = $region13
  $region12: #{gcn_net_forward.3} parent=0 // pred_region
    _
  $region13: #{gcn_net_forward.3} parent=0 // pred_fallthru
    _
  %p15 = scmp.eq.s32.totalorder 0, 0
  // Predicated region
  $region14: #{gcn_net_forward.3} parent=0 // pred_check
    %p16 = pneg %p15
  $region15: #{gcn_net_forward.3} parent=0 // pred_check_branch
    %18 = sbr.rel (%p16) target = $region17
  $region16: #{gcn_net_forward.3} parent=0 // pred_region
    %vm19 = vcmask 15360
    %20 = vst.msk [vmem:[#allocation2] sm:$0xff] %vm19, 0.0
    %21 = vst.msk [vmem:[#allocation2 + $0x8] sm:$0xff] %vm19, 0.0
    %22 = vst.msk [vmem:[#allocation2 + $0x10] sm:$0xff] %vm19, 0.0
    %23 = vst.msk [vmem:[#allocation2 + $0x18] sm:$0xff] %vm19, 0.0
    %24 = vst.msk [vmem:[#allocation2 + $0x20] sm:$0xff] %vm19, 0.0
    %25 = vst.msk [vmem:[#allocation2 + $0x28] sm:$0xff] %vm19, 0.0
    %26 = vst.msk [vmem:[#allocation2 + $0x30] sm:$0xff] %vm19, 0.0
    %27 = vst.msk [vmem:[#allocation2 + $0x38] sm:$0xff] %vm19, 0.0
    %28 = vst.msk [vmem:[#allocation2 + $0x40] sm:$0xff] %vm19, 0.0
    %29 = vst.msk [vmem:[#allocation2 + $0x48] sm:$0xff] %vm19, 0.0
    %30 = vst.msk [vmem:[#allocation2 + $0x50] sm:$0xff] %vm19, 0.0
    %31 = vst.msk [vmem:[#allocation2 + $0x58] sm:$0xff] %vm19, 0.0
    %32 = vst.msk [vmem:[#allocation2 + $0x60] sm:$0xff] %vm19, 0.0
    %33 = vst.msk [vmem:[#allocation2 + $0x68] sm:$0xff] %vm19, 0.0
    %34 = vst.msk [vmem:[#allocation2 + $0x70] sm:$0xff] %vm19, 0.0
    %35 = vst.msk [vmem:[#allocation2 + $0x78] sm:$0xff] %vm19, 0.0
  $region17: #{gcn_net_forward.3} parent=0 // pred_fallthru
    _
  %v36 = vld [vmem:[#allocation2] sm:$0xff]
  %v37 = vld [vmem:[#allocation2 + $0x8] sm:$0xff]
  %v38 = vld [vmem:[#allocation2 + $0x10] sm:$0xff]
  %v39 = vld [vmem:[#allocation2 + $0x18] sm:$0xff]
  %v40 = vld [vmem:[#allocation2 + $0x20] sm:$0xff]
  %v41 = vld [vmem:[#allocation2 + $0x28] sm:$0xff]
  %v42 = vld [vmem:[#allocation2 + $0x30] sm:$0xff]
  %v43 = vld [vmem:[#allocation2 + $0x38] sm:$0xff]
  %v44 = vld [vmem:[#allocation2 + $0x40] sm:$0xff]
  %v45 = vld [vmem:[#allocation2 + $0x48] sm:$0xff]
  %v46 = vld [vmem:[#allocation2 + $0x50] sm:$0xff]
  %v47 = vld [vmem:[#allocation2 + $0x58] sm:$0xff]
  %v48 = vld [vmem:[#allocation2 + $0x60] sm:$0xff]
  %v49 = vld [vmem:[#allocation2 + $0x68] sm:$0xff]
  %v50 = vld [vmem:[#allocation2 + $0x70] sm:$0xff]
  %v51 = vld [vmem:[#allocation2 + $0x78] sm:$0xff]
  %v52 = vld [vmem:[%s0] sm:$0xf]
  %v53 = vld [vmem:[%s0 + $0x4] sm:$0xf]
  %v54 = vld [vmem:[%s0 + $0x8] sm:$0xf]
  %v55 = vld [vmem:[%s0 + $0xc] sm:$0xf]
  %v56 = vld [vmem:[%s0 + $0x10] sm:$0xf]
  %v57 = vld [vmem:[%s0 + $0x14] sm:$0xf]
  %v58 = vld [vmem:[%s0 + $0x18] sm:$0xf]
  %v59 = vld [vmem:[%s0 + $0x1c] sm:$0xf]
  %v60 = vld [vmem:[%s0 + $0x20] sm:$0xf]
  %v61 = vld [vmem:[%s0 + $0x24] sm:$0xf]
  %v62 = vld [vmem:[%s0 + $0x28] sm:$0xf]
  %v63 = vld [vmem:[%s0 + $0x2c] sm:$0xf]
  %v64 = vld [vmem:[%s0 + $0x30] sm:$0xf]
  %v65 = vld [vmem:[%s0 + $0x34] sm:$0xf]
  %v66 = vld [vmem:[%s0 + $0x38] sm:$0xf]
  %v67 = vld [vmem:[%s0 + $0x3c] sm:$0xf]
  %v68 = vld [vmem:[%s1] sm:$0xf]
  %v69 = vld [vmem:[%s1 + $0x4] sm:$0xf]
  %v70 = vld [vmem:[%s1 + $0x8] sm:$0xf]
  %v71 = vld [vmem:[%s1 + $0xc] sm:$0xf]
  %v72 = vld [vmem:[%s1 + $0x10] sm:$0xf]
  %v73 = vld [vmem:[%s1 + $0x14] sm:$0xf]
  %v74 = vld [vmem:[%s1 + $0x18] sm:$0xf]
  %v75 = vld [vmem:[%s1 + $0x1c] sm:$0xf]
  %v76 = vld [vmem:[%s1 + $0x20] sm:$0xf]
  %v77 = vld [vmem:[%s1 + $0x24] sm:$0xf]
  %v78 = vld [vmem:[%s1 + $0x28] sm:$0xf]
  %v79 = vld [vmem:[%s1 + $0x2c] sm:$0xf]
  %v80 = vld [vmem:[%s1 + $0x30] sm:$0xf]
  %v81 = vld [vmem:[%s1 + $0x34] sm:$0xf]
  %v82 = vld [vmem:[%s1 + $0x38] sm:$0xf]
  %v83 = vld [vmem:[%s1 + $0x3c] sm:$0xf]
  %v100 = vunpack.c.l.b16 %v52
  %v101 = vunpack.c.l.b16 %v53
  %v102 = vunpack.c.l.b16 %v54
  %v103 = vunpack.c.l.b16 %v55
  %v104 = vunpack.c.l.b16 %v56
  %v105 = vunpack.c.l.b16 %v57
  %v106 = vunpack.c.l.b16 %v58
  %v107 = vunpack.c.l.b16 %v59
  %v108 = vunpack.c.l.b16 %v60
  %v109 = vunpack.c.l.b16 %v61
  %v110 = vunpack.c.l.b16 %v62
  %v111 = vunpack.c.l.b16 %v63
  %v112 = vunpack.c.l.b16 %v64
  %v113 = vunpack.c.l.b16 %v65
  %v114 = vunpack.c.l.b16 %v66
  %v115 = vunpack.c.l.b16 %v67
  %v116 = vpack.c.b16 %v101, %v100
  %v117 = vpack.c.b16 %v103, %v102
  %v118 = vpack.c.b16 %v105, %v104
  %v119 = vpack.c.b16 %v107, %v106
  %v120 = vpack.c.b16 %v109, %v108
  %v121 = vpack.c.b16 %v111, %v110
  %v122 = vpack.c.b16 %v113, %v112
  %v123 = vpack.c.b16 %v115, %v114
  %v148 = vunpack.c.l.b16 %v68
  %v149 = vunpack.c.l.b16 %v69
  %v150 = vunpack.c.l.b16 %v70
  %v151 = vunpack.c.l.b16 %v71
  %v152 = vunpack.c.l.b16 %v72
  %v153 = vunpack.c.l.b16 %v73
  %v154 = vunpack.c.l.b16 %v74
  %v155 = vunpack.c.l.b16 %v75
  %v156 = vunpack.c.l.b16 %v76
  %v157 = vunpack.c.l.b16 %v77
  %v158 = vunpack.c.l.b16 %v78
  %v159 = vunpack.c.l.b16 %v79
  %v160 = vunpack.c.l.b16 %v80
  %v161 = vunpack.c.l.b16 %v81
  %v162 = vunpack.c.l.b16 %v82
  %v163 = vunpack.c.l.b16 %v83
  %v164 = vpack.c.b16 %v149, %v148
  %v165 = vpack.c.b16 %v151, %v150
  %v166 = vpack.c.b16 %v153, %v152
  %v167 = vpack.c.b16 %v155, %v154
  %v168 = vpack.c.b16 %v157, %v156
  %v169 = vpack.c.b16 %v159, %v158
  %v170 = vpack.c.b16 %v161, %v160
  %v171 = vpack.c.b16 %v163, %v162
  %180 = vmatprep.subr.bf16.mxu0 0
  %181 = vmatpush1.bf16.msra.mxu0 %v164
  %182 = vmatprep.subr.bf16.mxu0 0
  %183 = vmatpush1.bf16.msra.mxu0 %v165
  %184 = vmatprep.subr.bf16.mxu0 0
  %185 = vmatpush1.bf16.msra.mxu0 %v166
  %186 = vmatprep.subr.bf16.mxu0 0
  %187 = vmatpush1.bf16.msra.mxu0 %v167
  %188 = vmatprep.subr.bf16.mxu0 0
  %189 = vmatpush1.bf16.msra.mxu0 %v168
  %190 = vmatprep.subr.bf16.mxu0 0
  %191 = vmatpush1.bf16.msra.mxu0 %v169
  %192 = vmatprep.subr.bf16.mxu0 0
  %193 = vmatpush1.bf16.msra.mxu0 %v170
  %194 = vmatprep.subr.bf16.mxu0 0
  %195 = vmatpush1.bf16.msra.mxu0 %v171
  %196 = vmatprep.subr.bf16.mxu0 0
  %197 = vmatpush1.bf16.msra.mxu0 0
  %198 = vmatprep.subr.bf16.mxu0 0
  %199 = vmatpush1.bf16.msra.mxu0 0
  %200 = vmatprep.subr.bf16.mxu0 0
  %201 = vmatpush1.bf16.msra.mxu0 0
  %202 = vmatprep.subr.bf16.mxu0 0
  %203 = vmatpush1.bf16.msra.mxu0 0
  %204 = vmatprep.subr.bf16.mxu0 0
  %205 = vmatpush1.bf16.msra.mxu0 0
  %206 = vmatprep.subr.bf16.mxu0 0
  %207 = vmatpush1.bf16.msra.mxu0 0
  %208 = vmatprep.subr.bf16.mxu0 0
  %209 = vmatpush1.bf16.msra.mxu0 0
  %210 = vmatprep.subr.bf16.mxu0 0
  %211 = vmatpush1.bf16.msra.mxu0 0
  %212 = vmatprep.mubr.bf16.mxu0 0
  %213 = vmatmul.mubr.bf16.gmra.mrb[0].mxu0 %v116
  %v214 = vpop.f32.mrb[0].mxu0
  %v215 = vadd.f32 0.0, %v214
  %v216 = vpop.f32.mrb[0].mxu0
  %v217 = vpop.f32.mrb[0].mxu0
  %v218 = vadd.f32 0.0, %v217
  %v219 = vpop.f32.mrb[0].mxu0
  %220 = vmatprep.mubr.bf16.mxu0 0
  %221 = vmatmul.mubr.bf16.gmra.mrb[0].mxu0 %v117
  %v222 = vpop.f32.mrb[0].mxu0
  %v223 = vadd.f32 0.0, %v222
  %v224 = vpop.f32.mrb[0].mxu0
  %v225 = vpop.f32.mrb[0].mxu0
  %v226 = vadd.f32 0.0, %v225
  %v227 = vpop.f32.mrb[0].mxu0
  %228 = vmatprep.mubr.bf16.mxu0 0
  %229 = vmatmul.mubr.bf16.gmra.mrb[0].mxu0 %v118
  %v230 = vpop.f32.mrb[0].mxu0
  %v231 = vadd.f32 0.0, %v230
  %v232 = vpop.f32.mrb[0].mxu0
  %v233 = vpop.f32.mrb[0].mxu0
  %v234 = vadd.f32 0.0, %v233
  %v235 = vpop.f32.mrb[0].mxu0
  %236 = vmatprep.mubr.bf16.mxu0 0
  %237 = vmatmul.mubr.bf16.gmra.mrb[0].mxu0 %v119
  %v238 = vpop.f32.mrb[0].mxu0
  %v239 = vadd.f32 0.0, %v238
  %v240 = vpop.f32.mrb[0].mxu0
  %v241 = vpop.f32.mrb[0].mxu0
  %v242 = vadd.f32 0.0, %v241
  %v243 = vpop.f32.mrb[0].mxu0
  %244 = vmatprep.mubr.bf16.mxu0 0
  %245 = vmatmul.mubr.bf16.gmra.mrb[0].mxu0 %v120
  %v246 = vpop.f32.mrb[0].mxu0
  %v247 = vadd.f32 0.0, %v246
  %v248 = vpop.f32.mrb[0].mxu0
  %v249 = vpop.f32.mrb[0].mxu0
  %v250 = vadd.f32 0.0, %v249
  %v251 = vpop.f32.mrb[0].mxu0
  %252 = vmatprep.mubr.bf16.mxu0 0
  %253 = vmatmul.mubr.bf16.gmra.mrb[0].mxu0 %v121
  %v254 = vpop.f32.mrb[0].mxu0
  %v255 = vadd.f32 0.0, %v254
  %v256 = vpop.f32.mrb[0].mxu0
  %v257 = vpop.f32.mrb[0].mxu0
  %v258 = vadd.f32 0.0, %v257
  %v259 = vpop.f32.mrb[0].mxu0
  %260 = vmatprep.mubr.bf16.mxu0 0
  %261 = vmatmul.mubr.bf16.gmra.mrb[0].mxu0 %v122
  %v262 = vpop.f32.mrb[0].mxu0
  %v263 = vadd.f32 0.0, %v262
  %v264 = vpop.f32.mrb[0].mxu0
  %v265 = vpop.f32.mrb[0].mxu0
  %v266 = vadd.f32 0.0, %v265
  %v267 = vpop.f32.mrb[0].mxu0
  %268 = vmatprep.mubr.bf16.mxu0 0
  %269 = vmatmul.mubr.bf16.gmra.mrb[0].mxu0 %v123
  %v270 = vpop.f32.mrb[0].mxu0
  %v271 = vadd.f32 0.0, %v270
  %v272 = vpop.f32.mrb[0].mxu0
  %v273 = vpop.f32.mrb[0].mxu0
  %v274 = vadd.f32 0.0, %v273
  %v275 = vpop.f32.mrb[0].mxu0
  %276 = vdwg.mxu0
  %v277 = vadd.f32 %v36, %v215
  %v278 = vadd.f32 %v37, %v218
  %v279 = vadd.f32 %v38, %v223
  %v280 = vadd.f32 %v39, %v226
  %v281 = vadd.f32 %v40, %v231
  %v282 = vadd.f32 %v41, %v234
  %v283 = vadd.f32 %v42, %v239
  %v284 = vadd.f32 %v43, %v242
  %v285 = vadd.f32 %v44, %v247
  %v286 = vadd.f32 %v45, %v250
  %v287 = vadd.f32 %v46, %v255
  %v288 = vadd.f32 %v47, %v258
  %v289 = vadd.f32 %v48, %v263
  %v290 = vadd.f32 %v49, %v266
  %v291 = vadd.f32 %v50, %v271
  %v292 = vadd.f32 %v51, %v274
  %vm293 = vcmask 15360
  %294 = vst.msk [vmem:[#allocation2] sm:$0xff] %vm293, %v277
  %295 = vst.msk [vmem:[#allocation2 + $0x8] sm:$0xff] %vm293, %v278
  %296 = vst.msk [vmem:[#allocation2 + $0x10] sm:$0xff] %vm293, %v279
  %297 = vst.msk [vmem:[#allocation2 + $0x18] sm:$0xff] %vm293, %v280
  %298 = vst.msk [vmem:[#allocation2 + $0x20] sm:$0xff] %vm293, %v281
  %299 = vst.msk [vmem:[#allocation2 + $0x28] sm:$0xff] %vm293, %v282
  %300 = vst.msk [vmem:[#allocation2 + $0x30] sm:$0xff] %vm293, %v283
  %301 = vst.msk [vmem:[#allocation2 + $0x38] sm:$0xff] %vm293, %v284
  %302 = vst.msk [vmem:[#allocation2 + $0x40] sm:$0xff] %vm293, %v285
  %303 = vst.msk [vmem:[#allocation2 + $0x48] sm:$0xff] %vm293, %v286
  %304 = vst.msk [vmem:[#allocation2 + $0x50] sm:$0xff] %vm293, %v287
  %305 = vst.msk [vmem:[#allocation2 + $0x58] sm:$0xff] %vm293, %v288
  %306 = vst.msk [vmem:[#allocation2 + $0x60] sm:$0xff] %vm293, %v289
  %307 = vst.msk [vmem:[#allocation2 + $0x68] sm:$0xff] %vm293, %v290
  %308 = vst.msk [vmem:[#allocation2 + $0x70] sm:$0xff] %vm293, %v291
  %309 = vst.msk [vmem:[#allocation2 + $0x78] sm:$0xff] %vm293, %v292
  // Predicated region
  $region18: #{gcn_net_forward.3} parent=0 // pred_check
    %p310 = pneg %p15
  $region19: #{gcn_net_forward.3} parent=0 // pred_check_branch
    %312 = sbr.rel (%p310) target = $region21
  $region20: #{gcn_net_forward.3} parent=0 // pred_region
    %v313 = vld [vmem:[#allocation2] sm:$0xff]
    %v314 = vld [vmem:[#allocation2 + $0x8] sm:$0xff]
    %v315 = vld [vmem:[#allocation2 + $0x10] sm:$0xff]
    %v316 = vld [vmem:[#allocation2 + $0x18] sm:$0xff]
    %v317 = vld [vmem:[#allocation2 + $0x20] sm:$0xff]
    %v318 = vld [vmem:[#allocation2 + $0x28] sm:$0xff]
    %v319 = vld [vmem:[#allocation2 + $0x30] sm:$0xff]
    %v320 = vld [vmem:[#allocation2 + $0x38] sm:$0xff]
    %v321 = vld [vmem:[#allocation2 + $0x40] sm:$0xff]
    %v322 = vld [vmem:[#allocation2 + $0x48] sm:$0xff]
    %v323 = vld [vmem:[#allocation2 + $0x50] sm:$0xff]
    %v324 = vld [vmem:[#allocation2 + $0x58] sm:$0xff]
    %v325 = vld [vmem:[#allocation2 + $0x60] sm:$0xff]
    %v326 = vld [vmem:[#allocation2 + $0x68] sm:$0xff]
    %v327 = vld [vmem:[#allocation2 + $0x70] sm:$0xff]
    %v328 = vld [vmem:[#allocation2 + $0x78] sm:$0xff]
    %v329 = vld [vmem:[%s2] sm:$0x1]
    %v331 = vlaneseq
    %v332 = vshrl.u32 %v331, 7
    %v333 = vsub.s32 0, %v332
    %v334 = vrot.slane %v329, %v333
    %v336 = vadd.f32 %v313, %v334
    %v337 = vadd.f32 %v314, %v334
    %v338 = vadd.f32 %v315, %v334
    %v339 = vadd.f32 %v316, %v334
    %v340 = vadd.f32 %v317, %v334
    %v341 = vadd.f32 %v318, %v334
    %v342 = vadd.f32 %v319, %v334
    %v343 = vadd.f32 %v320, %v334
    %v344 = vadd.f32 %v321, %v334
    %v345 = vadd.f32 %v322, %v334
    %v346 = vadd.f32 %v323, %v334
    %v347 = vadd.f32 %v324, %v334
    %v348 = vadd.f32 %v325, %v334
    %v349 = vadd.f32 %v326, %v334
    %v350 = vadd.f32 %v327, %v334
    %v351 = vadd.f32 %v328, %v334
    %352 = vst.msk [vmem:[%s3] sm:$0xff] %vm293, %v336
    %353 = vst.msk [vmem:[%s3 + $0x8] sm:$0xff] %vm293, %v337
    %354 = vst.msk [vmem:[%s3 + $0x10] sm:$0xff] %vm293, %v338
    %355 = vst.msk [vmem:[%s3 + $0x18] sm:$0xff] %vm293, %v339
    %356 = vst.msk [vmem:[%s3 + $0x20] sm:$0xff] %vm293, %v340
    %357 = vst.msk [vmem:[%s3 + $0x28] sm:$0xff] %vm293, %v341
    %358 = vst.msk [vmem:[%s3 + $0x30] sm:$0xff] %vm293, %v342
    %359 = vst.msk [vmem:[%s3 + $0x38] sm:$0xff] %vm293, %v343
    %360 = vst.msk [vmem:[%s3 + $0x40] sm:$0xff] %vm293, %v344
    %361 = vst.msk [vmem:[%s3 + $0x48] sm:$0xff] %vm293, %v345
    %362 = vst.msk [vmem:[%s3 + $0x50] sm:$0xff] %vm293, %v346
    %363 = vst.msk [vmem:[%s3 + $0x58] sm:$0xff] %vm293, %v347
    %364 = vst.msk [vmem:[%s3 + $0x60] sm:$0xff] %vm293, %v348
    %365 = vst.msk [vmem:[%s3 + $0x68] sm:$0xff] %vm293, %v349
    %366 = vst.msk [vmem:[%s3 + $0x70] sm:$0xff] %vm293, %v350
    %367 = vst.msk [vmem:[%s3 + $0x78] sm:$0xff] %vm293, %v351
  $region21: #{gcn_net_forward.3} parent=0 // pred_fallthru
    _
  // Predicated region
  $region22: #{gcn_net_forward.3} parent=0 // pred_check
    _
  $region23: #{gcn_net_forward.3} parent=0 // pred_check_branch
    %369 = sbr.rel (0) target = $region25
  $region24: #{gcn_net_forward.3} parent=0 // pred_region
    _
  $region25: #{gcn_net_forward.3} parent=0 // pred_fallthru
    _
  // Predicated region
  $region26: #{gcn_net_forward.3} parent=0 // pred_check
    _
  $region27: #{gcn_net_forward.3} parent=0 // pred_check_branch
    %371 = sbr.rel (0) target = $region29
  $region28: #{gcn_net_forward.3} parent=0 // pred_region
    _
  $region29: #{gcn_net_forward.3} parent=0 // pred_fallthru
    _

// kernel: gcn_net_forward.2
$region0: #{gcn_net_forward.2}
  #allocation0 [shape = 'u32[]', space=smem, size = 0x4, offset = 0x4, fixed_abs, tag = 'smem constant byte address 0x4 - core index']
  #allocation1 [shape = 'u32[144,128]{1,0:T(1,128)}', space=vmem, size = 0x12000, scoped, tag = 'internal scratch']
  #allocation2 [shape = 'f32[128,8]{1,0:T(8,128)}', space=vmem, size = 0x10000, scoped, tag = 'scratch operand']
  %s0 = inlined_call_operand.vmem [shape: bf16[128,128], index: 0, kind: input, shape index: {}]
  %s1 = inlined_call_operand.vmem [shape: bf16[128,8], index: 1, kind: input, shape index: {}]
  %s2 = inlined_call_operand.vmem [shape: f32[8,16], index: 2, kind: input, shape index: {}]
  %s3 = inlined_call_operand.vmem [shape: f32[1,16], index: 3, kind: input, shape index: {}]
  %s4 = inlined_call_operand.vmem [shape: f32[16,2], index: 4, kind: input, shape index: {}]
  %s5 = inlined_call_operand.vmem [shape: bf16[128,2], index: 5, kind: output, shape index: {}]
  %s6 = sld [smem:[#allocation0]]
  $region38: #{gcn_net_forward.2} parent=0
    _
  %s8 = ssub.s32 1, %s6
  %s9 = scalar_select 0, %s8, %s6
  // Predicated region
  $region2: #{gcn_net_forward.2} parent=0 // pred_check
    _
  $region3: #{gcn_net_forward.2} parent=0 // pred_check_branch
    %11 = sbr.rel (0) target = $region5
  $region4: #{gcn_net_forward.2} parent=0 // pred_region
    _
  $region5: #{gcn_net_forward.2} parent=0 // pred_fallthru
    _
  // Predicated region
  $region6: #{gcn_net_forward.2} parent=0 // pred_check
    _
  $region7: #{gcn_net_forward.2} parent=0 // pred_check_branch
    %13 = sbr.rel (0) target = $region9
  $region8: #{gcn_net_forward.2} parent=0 // pred_region
    _
  $region9: #{gcn_net_forward.2} parent=0 // pred_fallthru
    _
  // Predicated region
  $region10: #{gcn_net_forward.2} parent=0 // pred_check
    _
  $region11: #{gcn_net_forward.2} parent=0 // pred_check_branch
    %15 = sbr.rel (0) target = $region13
  $region12: #{gcn_net_forward.2} parent=0 // pred_region
    _
  $region13: #{gcn_net_forward.2} parent=0 // pred_fallthru
    _
  // Predicated region
  $region14: #{gcn_net_forward.2} parent=0 // pred_check
    _
  $region15: #{gcn_net_forward.2} parent=0 // pred_check_branch
    %17 = sbr.rel (0) target = $region17
  $region16: #{gcn_net_forward.2} parent=0 // pred_region
    _
  $region17: #{gcn_net_forward.2} parent=0 // pred_fallthru
    _
  // Predicated region
  $region18: #{gcn_net_forward.2} parent=0 // pred_check
    _
  $region19: #{gcn_net_forward.2} parent=0 // pred_check_branch
    %19 = sbr.rel (0) target = $region21
  $region20: #{gcn_net_forward.2} parent=0 // pred_region
    _
  $region21: #{gcn_net_forward.2} parent=0 // pred_fallthru
    _
  %p21 = scmp.eq.s32.totalorder 0, 0
  // Predicated region
  $region22: #{gcn_net_forward.2} parent=0 // pred_check
    %p22 = pneg %p21
  $region23: #{gcn_net_forward.2} parent=0 // pred_check_branch
    %24 = sbr.rel (%p22) target = $region25
  $region24: #{gcn_net_forward.2} parent=0 // pred_region
    %vm25 = vcmask 64512
    %26 = vst.msk [vmem:[#allocation2] sm:$0xff] %vm25, 0.0
    %27 = vst.msk [vmem:[#allocation2 + $0x8] sm:$0xff] %vm25, 0.0
    %28 = vst.msk [vmem:[#allocation2 + $0x10] sm:$0xff] %vm25, 0.0
    %29 = vst.msk [vmem:[#allocation2 + $0x18] sm:$0xff] %vm25, 0.0
    %30 = vst.msk [vmem:[#allocation2 + $0x20] sm:$0xff] %vm25, 0.0
    %31 = vst.msk [vmem:[#allocation2 + $0x28] sm:$0xff] %vm25, 0.0
    %32 = vst.msk [vmem:[#allocation2 + $0x30] sm:$0xff] %vm25, 0.0
    %33 = vst.msk [vmem:[#allocation2 + $0x38] sm:$0xff] %vm25, 0.0
    %34 = vst.msk [vmem:[#allocation2 + $0x40] sm:$0xff] %vm25, 0.0
    %35 = vst.msk [vmem:[#allocation2 + $0x48] sm:$0xff] %vm25, 0.0
    %36 = vst.msk [vmem:[#allocation2 + $0x50] sm:$0xff] %vm25, 0.0
    %37 = vst.msk [vmem:[#allocation2 + $0x58] sm:$0xff] %vm25, 0.0
    %38 = vst.msk [vmem:[#allocation2 + $0x60] sm:$0xff] %vm25, 0.0
    %39 = vst.msk [vmem:[#allocation2 + $0x68] sm:$0xff] %vm25, 0.0
    %40 = vst.msk [vmem:[#allocation2 + $0x70] sm:$0xff] %vm25, 0.0
    %41 = vst.msk [vmem:[#allocation2 + $0x78] sm:$0xff] %vm25, 0.0
  $region25: #{gcn_net_forward.2} parent=0 // pred_fallthru
    _
  %v42 = vld [vmem:[#allocation2] sm:$0xff]
  %v43 = vld [vmem:[#allocation2 + $0x8] sm:$0xff]
  %v44 = vld [vmem:[#allocation2 + $0x10] sm:$0xff]
  %v45 = vld [vmem:[#allocation2 + $0x18] sm:$0xff]
  %v46 = vld [vmem:[#allocation2 + $0x20] sm:$0xff]
  %v47 = vld [vmem:[#allocation2 + $0x28] sm:$0xff]
  %v48 = vld [vmem:[#allocation2 + $0x30] sm:$0xff]
  %v49 = vld [vmem:[#allocation2 + $0x38] sm:$0xff]
  %v50 = vld [vmem:[#allocation2 + $0x40] sm:$0xff]
  %v51 = vld [vmem:[#allocation2 + $0x48] sm:$0xff]
  %v52 = vld [vmem:[#allocation2 + $0x50] sm:$0xff]
  %v53 = vld [vmem:[#allocation2 + $0x58] sm:$0xff]
  %v54 = vld [vmem:[#allocation2 + $0x60] sm:$0xff]
  %v55 = vld [vmem:[#allocation2 + $0x68] sm:$0xff]
  %v56 = vld [vmem:[#allocation2 + $0x70] sm:$0xff]
  %v57 = vld [vmem:[#allocation2 + $0x78] sm:$0xff]
  %v58 = vld [vmem:[%s0] sm:$0xf]
  %v59 = vld [vmem:[%s0 + $0x4] sm:$0xf]
  %v60 = vld [vmem:[%s0 + $0x8] sm:$0xf]
  %v61 = vld [vmem:[%s0 + $0xc] sm:$0xf]
  %v62 = vld [vmem:[%s0 + $0x10] sm:$0xf]
  %v63 = vld [vmem:[%s0 + $0x14] sm:$0xf]
  %v64 = vld [vmem:[%s0 + $0x18] sm:$0xf]
  %v65 = vld [vmem:[%s0 + $0x1c] sm:$0xf]
  %v66 = vld [vmem:[%s0 + $0x20] sm:$0xf]
  %v67 = vld [vmem:[%s0 + $0x24] sm:$0xf]
  %v68 = vld [vmem:[%s0 + $0x28] sm:$0xf]
  %v69 = vld [vmem:[%s0 + $0x2c] sm:$0xf]
  %v70 = vld [vmem:[%s0 + $0x30] sm:$0xf]
  %v71 = vld [vmem:[%s0 + $0x34] sm:$0xf]
  %v72 = vld [vmem:[%s0 + $0x38] sm:$0xf]
  %v73 = vld [vmem:[%s0 + $0x3c] sm:$0xf]
  %v74 = vld [vmem:[%s1] sm:$0xf]
  %v75 = vld [vmem:[%s1 + $0x4] sm:$0xf]
  %v76 = vld [vmem:[%s1 + $0x8] sm:$0xf]
  %v77 = vld [vmem:[%s1 + $0xc] sm:$0xf]
  %v78 = vld [vmem:[%s1 + $0x10] sm:$0xf]
  %v79 = vld [vmem:[%s1 + $0x14] sm:$0xf]
  %v80 = vld [vmem:[%s1 + $0x18] sm:$0xf]
  %v81 = vld [vmem:[%s1 + $0x1c] sm:$0xf]
  %v82 = vld [vmem:[%s1 + $0x20] sm:$0xf]
  %v83 = vld [vmem:[%s1 + $0x24] sm:$0xf]
  %v84 = vld [vmem:[%s1 + $0x28] sm:$0xf]
  %v85 = vld [vmem:[%s1 + $0x2c] sm:$0xf]
  %v86 = vld [vmem:[%s1 + $0x30] sm:$0xf]
  %v87 = vld [vmem:[%s1 + $0x34] sm:$0xf]
  %v88 = vld [vmem:[%s1 + $0x38] sm:$0xf]
  %v89 = vld [vmem:[%s1 + $0x3c] sm:$0xf]
  %v106 = vunpack.c.l.b16 %v58
  %v107 = vunpack.c.l.b16 %v59
  %v108 = vunpack.c.l.b16 %v60
  %v109 = vunpack.c.l.b16 %v61
  %v110 = vunpack.c.l.b16 %v62
  %v111 = vunpack.c.l.b16 %v63
  %v112 = vunpack.c.l.b16 %v64
  %v113 = vunpack.c.l.b16 %v65
  %v114 = vunpack.c.l.b16 %v66
  %v115 = vunpack.c.l.b16 %v67
  %v116 = vunpack.c.l.b16 %v68
  %v117 = vunpack.c.l.b16 %v69
  %v118 = vunpack.c.l.b16 %v70
  %v119 = vunpack.c.l.b16 %v71
  %v120 = vunpack.c.l.b16 %v72
  %v121 = vunpack.c.l.b16 %v73
  %v122 = vpack.c.b16 %v107, %v106
  %v123 = vpack.c.b16 %v109, %v108
  %v124 = vpack.c.b16 %v111, %v110
  %v125 = vpack.c.b16 %v113, %v112
  %v126 = vpack.c.b16 %v115, %v114
  %v127 = vpack.c.b16 %v117, %v116
  %v128 = vpack.c.b16 %v119, %v118
  %v129 = vpack.c.b16 %v121, %v120
  %v154 = vunpack.c.l.b16 %v74
  %v155 = vunpack.c.l.b16 %v75
  %v156 = vunpack.c.l.b16 %v76
  %v157 = vunpack.c.l.b16 %v77
  %v158 = vunpack.c.l.b16 %v78
  %v159 = vunpack.c.l.b16 %v79
  %v160 = vunpack.c.l.b16 %v80
  %v161 = vunpack.c.l.b16 %v81
  %v162 = vunpack.c.l.b16 %v82
  %v163 = vunpack.c.l.b16 %v83
  %v164 = vunpack.c.l.b16 %v84
  %v165 = vunpack.c.l.b16 %v85
  %v166 = vunpack.c.l.b16 %v86
  %v167 = vunpack.c.l.b16 %v87
  %v168 = vunpack.c.l.b16 %v88
  %v169 = vunpack.c.l.b16 %v89
  %v170 = vpack.c.b16 %v155, %v154
  %v171 = vpack.c.b16 %v157, %v156
  %v172 = vpack.c.b16 %v159, %v158
  %v173 = vpack.c.b16 %v161, %v160
  %v174 = vpack.c.b16 %v163, %v162
  %v175 = vpack.c.b16 %v165, %v164
  %v176 = vpack.c.b16 %v167, %v166
  %v177 = vpack.c.b16 %v169, %v168
  %186 = vmatprep.subr.bf16.mxu0 0
  %187 = vmatpush1.bf16.msra.mxu0 %v170
  %188 = vmatprep.subr.bf16.mxu0 0
  %189 = vmatpush1.bf16.msra.mxu0 %v171
  %190 = vmatprep.subr.bf16.mxu0 0
  %191 = vmatpush1.bf16.msra.mxu0 %v172
  %192 = vmatprep.subr.bf16.mxu0 0
  %193 = vmatpush1.bf16.msra.mxu0 %v173
  %194 = vmatprep.subr.bf16.mxu0 0
  %195 = vmatpush1.bf16.msra.mxu0 %v174
  %196 = vmatprep.subr.bf16.mxu0 0
  %197 = vmatpush1.bf16.msra.mxu0 %v175
  %198 = vmatprep.subr.bf16.mxu0 0
  %199 = vmatpush1.bf16.msra.mxu0 %v176
  %200 = vmatprep.subr.bf16.mxu0 0
  %201 = vmatpush1.bf16.msra.mxu0 %v177
  %202 = vmatprep.subr.bf16.mxu0 0
  %203 = vmatpush1.bf16.msra.mxu0 0
  %204 = vmatprep.subr.bf16.mxu0 0
  %205 = vmatpush1.bf16.msra.mxu0 0
  %206 = vmatprep.subr.bf16.mxu0 0
  %207 = vmatpush1.bf16.msra.mxu0 0
  %208 = vmatprep.subr.bf16.mxu0 0
  %209 = vmatpush1.bf16.msra.mxu0 0
  %210 = vmatprep.subr.bf16.mxu0 0
  %211 = vmatpush1.bf16.msra.mxu0 0
  %212 = vmatprep.subr.bf16.mxu0 0
  %213 = vmatpush1.bf16.msra.mxu0 0
  %214 = vmatprep.subr.bf16.mxu0 0
  %215 = vmatpush1.bf16.msra.mxu0 0
  %216 = vmatprep.subr.bf16.mxu0 0
  %217 = vmatpush1.bf16.msra.mxu0 0
  %218 = vmatprep.mubr.bf16.mxu0 0
  %219 = vmatmul.mubr.bf16.gmra.mrb[0].mxu0 %v122
  %v220 = vpop.f32.mrb[0].mxu0
  %v221 = vadd.f32 0.0, %v220
  %v222 = vpop.f32.mrb[0].mxu0
  %v223 = vpop.f32.mrb[0].mxu0
  %v224 = vadd.f32 0.0, %v223
  %v225 = vpop.f32.mrb[0].mxu0
  %226 = vmatprep.mubr.bf16.mxu0 0
  %227 = vmatmul.mubr.bf16.gmra.mrb[0].mxu0 %v123
  %v228 = vpop.f32.mrb[0].mxu0
  %v229 = vadd.f32 0.0, %v228
  %v230 = vpop.f32.mrb[0].mxu0
  %v231 = vpop.f32.mrb[0].mxu0
  %v232 = vadd.f32 0.0, %v231
  %v233 = vpop.f32.mrb[0].mxu0
  %234 = vmatprep.mubr.bf16.mxu0 0
  %235 = vmatmul.mubr.bf16.gmra.mrb[0].mxu0 %v124
  %v236 = vpop.f32.mrb[0].mxu0
  %v237 = vadd.f32 0.0, %v236
  %v238 = vpop.f32.mrb[0].mxu0
  %v239 = vpop.f32.mrb[0].mxu0
  %v240 = vadd.f32 0.0, %v239
  %v241 = vpop.f32.mrb[0].mxu0
  %242 = vmatprep.mubr.bf16.mxu0 0
  %243 = vmatmul.mubr.bf16.gmra.mrb[0].mxu0 %v125
  %v244 = vpop.f32.mrb[0].mxu0
  %v245 = vadd.f32 0.0, %v244
  %v246 = vpop.f32.mrb[0].mxu0
  %v247 = vpop.f32.mrb[0].mxu0
  %v248 = vadd.f32 0.0, %v247
  %v249 = vpop.f32.mrb[0].mxu0
  %250 = vmatprep.mubr.bf16.mxu0 0
  %251 = vmatmul.mubr.bf16.gmra.mrb[0].mxu0 %v126
  %v252 = vpop.f32.mrb[0].mxu0
  %v253 = vadd.f32 0.0, %v252
  %v254 = vpop.f32.mrb[0].mxu0
  %v255 = vpop.f32.mrb[0].mxu0
  %v256 = vadd.f32 0.0, %v255
  %v257 = vpop.f32.mrb[0].mxu0
  %258 = vmatprep.mubr.bf16.mxu0 0
  %259 = vmatmul.mubr.bf16.gmra.mrb[0].mxu0 %v127
  %v260 = vpop.f32.mrb[0].mxu0
  %v261 = vadd.f32 0.0, %v260
  %v262 = vpop.f32.mrb[0].mxu0
  %v263 = vpop.f32.mrb[0].mxu0
  %v264 = vadd.f32 0.0, %v263
  %v265 = vpop.f32.mrb[0].mxu0
  %266 = vmatprep.mubr.bf16.mxu0 0
  %267 = vmatmul.mubr.bf16.gmra.mrb[0].mxu0 %v128
  %v268 = vpop.f32.mrb[0].mxu0
  %v269 = vadd.f32 0.0, %v268
  %v270 = vpop.f32.mrb[0].mxu0
  %v271 = vpop.f32.mrb[0].mxu0
  %v272 = vadd.f32 0.0, %v271
  %v273 = vpop.f32.mrb[0].mxu0
  %274 = vmatprep.mubr.bf16.mxu0 0
  %275 = vmatmul.mubr.bf16.gmra.mrb[0].mxu0 %v129
  %v276 = vpop.f32.mrb[0].mxu0
  %v277 = vadd.f32 0.0, %v276
  %v278 = vpop.f32.mrb[0].mxu0
  %v279 = vpop.f32.mrb[0].mxu0
  %v280 = vadd.f32 0.0, %v279
  %v281 = vpop.f32.mrb[0].mxu0
  %282 = vdwg.mxu0
  %v283 = vadd.f32 %v42, %v221
  %v284 = vadd.f32 %v43, %v224
  %v285 = vadd.f32 %v44, %v229
  %v286 = vadd.f32 %v45, %v232
  %v287 = vadd.f32 %v46, %v237
  %v288 = vadd.f32 %v47, %v240
  %v289 = vadd.f32 %v48, %v245
  %v290 = vadd.f32 %v49, %v248
  %v291 = vadd.f32 %v50, %v253
  %v292 = vadd.f32 %v51, %v256
  %v293 = vadd.f32 %v52, %v261
  %v294 = vadd.f32 %v53, %v264
  %v295 = vadd.f32 %v54, %v269
  %v296 = vadd.f32 %v55, %v272
  %v297 = vadd.f32 %v56, %v277
  %v298 = vadd.f32 %v57, %v280
  %vm299 = vcmask 64512
  %300 = vst.msk [vmem:[#allocation2] sm:$0xff] %vm299, %v283
  %301 = vst.msk [vmem:[#allocation2 + $0x8] sm:$0xff] %vm299, %v284
  %302 = vst.msk [vmem:[#allocation2 + $0x10] sm:$0xff] %vm299, %v285
  %303 = vst.msk [vmem:[#allocation2 + $0x18] sm:$0xff] %vm299, %v286
  %304 = vst.msk [vmem:[#allocation2 + $0x20] sm:$0xff] %vm299, %v287
  %305 = vst.msk [vmem:[#allocation2 + $0x28] sm:$0xff] %vm299, %v288
  %306 = vst.msk [vmem:[#allocation2 + $0x30] sm:$0xff] %vm299, %v289
  %307 = vst.msk [vmem:[#allocation2 + $0x38] sm:$0xff] %vm299, %v290
  %308 = vst.msk [vmem:[#allocation2 + $0x40] sm:$0xff] %vm299, %v291
  %309 = vst.msk [vmem:[#allocation2 + $0x48] sm:$0xff] %vm299, %v292
  %310 = vst.msk [vmem:[#allocation2 + $0x50] sm:$0xff] %vm299, %v293
  %311 = vst.msk [vmem:[#allocation2 + $0x58] sm:$0xff] %vm299, %v294
  %312 = vst.msk [vmem:[#allocation2 + $0x60] sm:$0xff] %vm299, %v295
  %313 = vst.msk [vmem:[#allocation2 + $0x68] sm:$0xff] %vm299, %v296
  %314 = vst.msk [vmem:[#allocation2 + $0x70] sm:$0xff] %vm299, %v297
  %315 = vst.msk [vmem:[#allocation2 + $0x78] sm:$0xff] %vm299, %v298
  // Predicated region
  $region26: #{gcn_net_forward.2} parent=0 // pred_check
    %p316 = pneg %p21
  $region27: #{gcn_net_forward.2} parent=0 // pred_check_branch
    %318 = sbr.rel (%p316) target = $region29
  $region28: #{gcn_net_forward.2} parent=0 // pred_region
    %v319 = vld [vmem:[#allocation2] sm:$0xff]
    %v320 = vld [vmem:[#allocation2 + $0x8] sm:$0xff]
    %v321 = vld [vmem:[#allocation2 + $0x10] sm:$0xff]
    %v322 = vld [vmem:[#allocation2 + $0x18] sm:$0xff]
    %v323 = vld [vmem:[#allocation2 + $0x20] sm:$0xff]
    %v324 = vld [vmem:[#allocation2 + $0x28] sm:$0xff]
    %v325 = vld [vmem:[#allocation2 + $0x30] sm:$0xff]
    %v326 = vld [vmem:[#allocation2 + $0x38] sm:$0xff]
    %v327 = vld [vmem:[#allocation2 + $0x40] sm:$0xff]
    %v328 = vld [vmem:[#allocation2 + $0x48] sm:$0xff]
    %v329 = vld [vmem:[#allocation2 + $0x50] sm:$0xff]
    %v330 = vld [vmem:[#allocation2 + $0x58] sm:$0xff]
    %v331 = vld [vmem:[#allocation2 + $0x60] sm:$0xff]
    %v332 = vld [vmem:[#allocation2 + $0x68] sm:$0xff]
    %v333 = vld [vmem:[#allocation2 + $0x70] sm:$0xff]
    %v334 = vld [vmem:[#allocation2 + $0x78] sm:$0xff]
    %v335 = vld [vmem:[%s2] sm:$0xff]
    %v336 = vld [vmem:[%s3] sm:$0x1]
    %v338 = vlaneseq
    %v339 = vshrl.u32 %v338, 7
    %v340 = vsub.s32 0, %v339
    %v341 = vrot.slane %v336, %v340
    %v344 = vsel %vm299, %v319, 0
    %v347 = vsel %vm299, %v320, 0
    %v350 = vsel %vm299, %v321, 0
    %v353 = vsel %vm299, %v322, 0
    %v356 = vsel %vm299, %v323, 0
    %v359 = vsel %vm299, %v324, 0
    %v362 = vsel %vm299, %v325, 0
    %v365 = vsel %vm299, %v326, 0
    %v368 = vsel %vm299, %v327, 0
    %v371 = vsel %vm299, %v328, 0
    %v374 = vsel %vm299, %v329, 0
    %v377 = vsel %vm299, %v330, 0
    %v380 = vsel %vm299, %v331, 0
    %v383 = vsel %vm299, %v332, 0
    %v386 = vsel %vm299, %v333, 0
    %v389 = vsel %vm299, %v334, 0
    %391 = vmatprep.subr.mxu0 0.0
    %392 = vmatpush1.msra.mxu0 %v335
    %393 = vmatprep.subr.mxu0 0.0
    %394 = vmatpush1.msra.mxu0 0.0
    %395 = vmatprep.subr.mxu0 0.0
    %396 = vmatpush1.msra.mxu0 0.0
    %397 = vmatprep.subr.mxu0 0.0
    %398 = vmatpush1.msra.mxu0 0.0
    %399 = vmatprep.subr.mxu0 0.0
    %400 = vmatpush1.msra.mxu0 0.0
    %401 = vmatprep.subr.mxu0 0.0
    %402 = vmatpush1.msra.mxu0 0.0
    %403 = vmatprep.subr.mxu0 0.0
    %404 = vmatpush1.msra.mxu0 0.0
    %405 = vmatprep.subr.mxu0 0.0
    %406 = vmatpush1.msra.mxu0 0.0
    %407 = vmatprep.subr.mxu0 0.0
    %408 = vmatpush1.msra.mxu0 0.0
    %409 = vmatprep.subr.mxu0 0.0
    %410 = vmatpush1.msra.mxu0 0.0
    %411 = vmatprep.subr.mxu0 0.0
    %412 = vmatpush1.msra.mxu0 0.0
    %413 = vmatprep.subr.mxu0 0.0
    %414 = vmatpush1.msra.mxu0 0.0
    %415 = vmatprep.subr.mxu0 0.0
    %416 = vmatpush1.msra.mxu0 0.0
    %417 = vmatprep.subr.mxu0 0.0
    %418 = vmatpush1.msra.mxu0 0.0
    %419 = vmatprep.subr.mxu0 0.0
    %420 = vmatpush1.msra.mxu0 0.0
    %421 = vmatprep.subr.mxu0 0.0
    %422 = vmatpush1.msra.mxu0 0.0
    %423 = vmatprep.subr.mxu0 0.0
    %424 = vmatpush1.msra.mxu0 0.0
    %425 = vmatprep.subr.mxu0 0.0
    %426 = vmatpush1.msra.mxu0 0.0
    %427 = vmatprep.subr.mxu0 0.0
    %428 = vmatpush1.msra.mxu0 0.0
    %429 = vmatprep.subr.mxu0 0.0
    %430 = vmatpush1.msra.mxu0 0.0
    %431 = vmatprep.subr.mxu0 0.0
    %432 = vmatpush1.msra.mxu0 0.0
    %433 = vmatprep.subr.mxu0 0.0
    %434 = vmatpush1.msra.mxu0 0.0
    %435 = vmatprep.subr.mxu0 0.0
    %436 = vmatpush1.msra.mxu0 0.0
    %437 = vmatprep.subr.mxu0 0.0
    %438 = vmatpush1.msra.mxu0 0.0
    %439 = vmatprep.subr.mxu0 0.0
    %440 = vmatpush1.msra.mxu0 0.0
    %441 = vmatprep.subr.mxu0 0.0
    %442 = vmatpush1.msra.mxu0 0.0
    %443 = vmatprep.subr.mxu0 0.0
    %444 = vmatpush1.msra.mxu0 0.0
    %445 = vmatprep.subr.mxu0 0.0
    %446 = vmatpush1.msra.mxu0 0.0
    %447 = vmatprep.subr.mxu0 0.0
    %448 = vmatpush1.msra.mxu0 0.0
    %449 = vmatprep.subr.mxu0 0.0
    %450 = vmatpush1.msra.mxu0 0.0
    %451 = vmatprep.subr.mxu0 0.0
    %452 = vmatpush1.msra.mxu0 0.0
    %453 = vmatprep.subr.mxu0 0.0
    %454 = vmatpush1.msra.mxu0 0.0
    %455 = vmatprep.mubr.f32.mxu0 0.0
    %456 = vmatmul.mubr.f32.gmra.mrb[0].mxu0 %v344
    %v457 = vpop.f32.mrb[0].mxu0
    %v458 = vadd.f32 %v341, %v457
    %v459 = vpop.f32.mrb[0].mxu0
    %460 = vmatprep.mubr.f32.mxu0 0.0
    %461 = vmatmul.mubr.f32.gmra.mrb[0].mxu0 %v347
    %v462 = vpop.f32.mrb[0].mxu0
    %v463 = vadd.f32 %v341, %v462
    %v464 = vpop.f32.mrb[0].mxu0
    %465 = vmatprep.mubr.f32.mxu0 0.0
    %466 = vmatmul.mubr.f32.gmra.mrb[0].mxu0 %v350
    %v467 = vpop.f32.mrb[0].mxu0
    %v468 = vadd.f32 %v341, %v467
    %v469 = vpop.f32.mrb[0].mxu0
    %470 = vmatprep.mubr.f32.mxu0 0.0
    %471 = vmatmul.mubr.f32.gmra.mrb[0].mxu0 %v353
    %v472 = vpop.f32.mrb[0].mxu0
    %v473 = vadd.f32 %v341, %v472
    %v474 = vpop.f32.mrb[0].mxu0
    %475 = vmatprep.mubr.f32.mxu0 0.0
    %476 = vmatmul.mubr.f32.gmra.mrb[0].mxu0 %v356
    %v477 = vpop.f32.mrb[0].mxu0
    %v478 = vadd.f32 %v341, %v477
    %v479 = vpop.f32.mrb[0].mxu0
    %480 = vmatprep.mubr.f32.mxu0 0.0
    %481 = vmatmul.mubr.f32.gmra.mrb[0].mxu0 %v359
    %v482 = vpop.f32.mrb[0].mxu0
    %v483 = vadd.f32 %v341, %v482
    %v484 = vpop.f32.mrb[0].mxu0
    %485 = vmatprep.mubr.f32.mxu0 0.0
    %486 = vmatmul.mubr.f32.gmra.mrb[0].mxu0 %v362
    %v487 = vpop.f32.mrb[0].mxu0
    %v488 = vadd.f32 %v341, %v487
    %v489 = vpop.f32.mrb[0].mxu0
    %490 = vmatprep.mubr.f32.mxu0 0.0
    %491 = vmatmul.mubr.f32.gmra.mrb[0].mxu0 %v365
    %v492 = vpop.f32.mrb[0].mxu0
    %v493 = vadd.f32 %v341, %v492
    %v494 = vpop.f32.mrb[0].mxu0
    %495 = vmatprep.mubr.f32.mxu0 0.0
    %496 = vmatmul.mubr.f32.gmra.mrb[0].mxu0 %v368
    %v497 = vpop.f32.mrb[0].mxu0
    %v498 = vadd.f32 %v341, %v497
    %v499 = vpop.f32.mrb[0].mxu0
    %500 = vmatprep.mubr.f32.mxu0 0.0
    %501 = vmatmul.mubr.f32.gmra.mrb[0].mxu0 %v371
    %v502 = vpop.f32.mrb[0].mxu0
    %v503 = vadd.f32 %v341, %v502
    %v504 = vpop.f32.mrb[0].mxu0
    %505 = vmatprep.mubr.f32.mxu0 0.0
    %506 = vmatmul.mubr.f32.gmra.mrb[0].mxu0 %v374
    %v507 = vpop.f32.mrb[0].mxu0
    %v508 = vadd.f32 %v341, %v507
    %v509 = vpop.f32.mrb[0].mxu0
    %510 = vmatprep.mubr.f32.mxu0 0.0
    %511 = vmatmul.mubr.f32.gmra.mrb[0].mxu0 %v377
    %v512 = vpop.f32.mrb[0].mxu0
    %v513 = vadd.f32 %v341, %v512
    %v514 = vpop.f32.mrb[0].mxu0
    %515 = vmatprep.mubr.f32.mxu0 0.0
    %516 = vmatmul.mubr.f32.gmra.mrb[0].mxu0 %v380
    %v517 = vpop.f32.mrb[0].mxu0
    %v518 = vadd.f32 %v341, %v517
    %v519 = vpop.f32.mrb[0].mxu0
    %520 = vmatprep.mubr.f32.mxu0 0.0
    %521 = vmatmul.mubr.f32.gmra.mrb[0].mxu0 %v383
    %v522 = vpop.f32.mrb[0].mxu0
    %v523 = vadd.f32 %v341, %v522
    %v524 = vpop.f32.mrb[0].mxu0
    %525 = vmatprep.mubr.f32.mxu0 0.0
    %526 = vmatmul.mubr.f32.gmra.mrb[0].mxu0 %v386
    %v527 = vpop.f32.mrb[0].mxu0
    %v528 = vadd.f32 %v341, %v527
    %v529 = vpop.f32.mrb[0].mxu0
    %530 = vmatprep.mubr.f32.mxu0 0.0
    %531 = vmatmul.mubr.f32.gmra.mrb[0].mxu0 %v389
    %v532 = vpop.f32.mrb[0].mxu0
    %v533 = vadd.f32 %v341, %v532
    %v534 = vpop.f32.mrb[0].mxu0
    %535 = vdwg.mxu0
    %v536 = vmax.f32 %v458, 0.0
    %v537 = vmax.f32 %v463, 0.0
    %v538 = vmax.f32 %v468, 0.0
    %v539 = vmax.f32 %v473, 0.0
    %v540 = vmax.f32 %v478, 0.0
    %v541 = vmax.f32 %v483, 0.0
    %v542 = vmax.f32 %v488, 0.0
    %v543 = vmax.f32 %v493, 0.0
    %v544 = vmax.f32 %v498, 0.0
    %v545 = vmax.f32 %v503, 0.0
    %v546 = vmax.f32 %v508, 0.0
    %v547 = vmax.f32 %v513, 0.0
    %v548 = vmax.f32 %v518, 0.0
    %v549 = vmax.f32 %v523, 0.0
    %v550 = vmax.f32 %v528, 0.0
    %v551 = vmax.f32 %v533, 0.0
    %v552 = vld [vmem:[%s4] sm:$0xff]
    %v553 = vld [vmem:[%s4 + $0x8] sm:$0xff]
    %vm554 = vcmask 130048
    %v556 = vsel %vm554, %v536, 0
    %v559 = vsel %vm554, %v537, 0
    %v562 = vsel %vm554, %v538, 0
    %v565 = vsel %vm554, %v539, 0
    %v568 = vsel %vm554, %v540, 0
    %v571 = vsel %vm554, %v541, 0
    %v574 = vsel %vm554, %v542, 0
    %v577 = vsel %vm554, %v543, 0
    %v580 = vsel %vm554, %v544, 0
    %v583 = vsel %vm554, %v545, 0
    %v586 = vsel %vm554, %v546, 0
    %v589 = vsel %vm554, %v547, 0
    %v592 = vsel %vm554, %v548, 0
    %v595 = vsel %vm554, %v549, 0
    %v598 = vsel %vm554, %v550, 0
    %v601 = vsel %vm554, %v551, 0
    %603 = vmatprep.subr.mxu0 0.0
    %604 = vmatpush1.msra.mxu0 %v552
    %605 = vmatprep.subr.mxu0 0.0
    %606 = vmatpush1.msra.mxu0 %v553
    %607 = vmatprep.subr.mxu0 0.0
    %608 = vmatpush1.msra.mxu0 0.0
    %609 = vmatprep.subr.mxu0 0.0
    %610 = vmatpush1.msra.mxu0 0.0
    %611 = vmatprep.subr.mxu0 0.0
    %612 = vmatpush1.msra.mxu0 0.0
    %613 = vmatprep.subr.mxu0 0.0
    %614 = vmatpush1.msra.mxu0 0.0
    %615 = vmatprep.subr.mxu0 0.0
    %616 = vmatpush1.msra.mxu0 0.0
    %617 = vmatprep.subr.mxu0 0.0
    %618 = vmatpush1.msra.mxu0 0.0
    %619 = vmatprep.subr.mxu0 0.0
    %620 = vmatpush1.msra.mxu0 0.0
    %621 = vmatprep.subr.mxu0 0.0
    %622 = vmatpush1.msra.mxu0 0.0
    %623 = vmatprep.subr.mxu0 0.0
    %624 = vmatpush1.msra.mxu0 0.0
    %625 = vmatprep.subr.mxu0 0.0
    %626 = vmatpush1.msra.mxu0 0.0
    %627 = vmatprep.subr.mxu0 0.0
    %628 = vmatpush1.msra.mxu0 0.0
    %629 = vmatprep.subr.mxu0 0.0
    %630 = vmatpush1.msra.mxu0 0.0
    %631 = vmatprep.subr.mxu0 0.0
    %632 = vmatpush1.msra.mxu0 0.0
    %633 = vmatprep.subr.mxu0 0.0
    %634 = vmatpush1.msra.mxu0 0.0
    %635 = vmatprep.subr.mxu0 0.0
    %636 = vmatpush1.msra.mxu0 0.0
    %637 = vmatprep.subr.mxu0 0.0
    %638 = vmatpush1.msra.mxu0 0.0
    %639 = vmatprep.subr.mxu0 0.0
    %640 = vmatpush1.msra.mxu0 0.0
    %641 = vmatprep.subr.mxu0 0.0
    %642 = vmatpush1.msra.mxu0 0.0
    %643 = vmatprep.subr.mxu0 0.0
    %644 = vmatpush1.msra.mxu0 0.0
    %645 = vmatprep.subr.mxu0 0.0
    %646 = vmatpush1.msra.mxu0 0.0
    %647 = vmatprep.subr.mxu0 0.0
    %648 = vmatpush1.msra.mxu0 0.0
    %649 = vmatprep.subr.mxu0 0.0
    %650 = vmatpush1.msra.mxu0 0.0
    %651 = vmatprep.subr.mxu0 0.0
    %652 = vmatpush1.msra.mxu0 0.0
    %653 = vmatprep.subr.mxu0 0.0
    %654 = vmatpush1.msra.mxu0 0.0
    %655 = vmatprep.subr.mxu0 0.0
    %656 = vmatpush1.msra.mxu0 0.0
    %657 = vmatprep.subr.mxu0 0.0
    %658 = vmatpush1.msra.mxu0 0.0
    %659 = vmatprep.subr.mxu0 0.0
    %660 = vmatpush1.msra.mxu0 0.0
    %661 = vmatprep.subr.mxu0 0.0
    %662 = vmatpush1.msra.mxu0 0.0
    %663 = vmatprep.subr.mxu0 0.0
    %664 = vmatpush1.msra.mxu0 0.0
    %665 = vmatprep.subr.mxu0 0.0
    %666 = vmatpush1.msra.mxu0 0.0
    %667 = vmatprep.mubr.f32.mxu0 0.0
    %668 = vmatmul.mubr.f32.gmra.mrb[0].mxu0 %v556
    %v669 = vpop.f32.mrb[0].mxu0
    %v670 = vadd.f32 0.0, %v669
    %v671 = vpop.f32.mrb[0].mxu0
    %672 = vmatprep.mubr.f32.mxu0 0.0
    %673 = vmatmul.mubr.f32.gmra.mrb[0].mxu0 %v559
    %v674 = vpop.f32.mrb[0].mxu0
    %v675 = vadd.f32 0.0, %v674
    %v676 = vpop.f32.mrb[0].mxu0
    %677 = vmatprep.mubr.f32.mxu0 0.0
    %678 = vmatmul.mubr.f32.gmra.mrb[0].mxu0 %v562
    %v679 = vpop.f32.mrb[0].mxu0
    %v680 = vadd.f32 0.0, %v679
    %v681 = vpop.f32.mrb[0].mxu0
    %682 = vmatprep.mubr.f32.mxu0 0.0
    %683 = vmatmul.mubr.f32.gmra.mrb[0].mxu0 %v565
    %v684 = vpop.f32.mrb[0].mxu0
    %v685 = vadd.f32 0.0, %v684
    %v686 = vpop.f32.mrb[0].mxu0
    %687 = vmatprep.mubr.f32.mxu0 0.0
    %688 = vmatmul.mubr.f32.gmra.mrb[0].mxu0 %v568
    %v689 = vpop.f32.mrb[0].mxu0
    %v690 = vadd.f32 0.0, %v689
    %v691 = vpop.f32.mrb[0].mxu0
    %692 = vmatprep.mubr.f32.mxu0 0.0
    %693 = vmatmul.mubr.f32.gmra.mrb[0].mxu0 %v571
    %v694 = vpop.f32.mrb[0].mxu0
    %v695 = vadd.f32 0.0, %v694
    %v696 = vpop.f32.mrb[0].mxu0
    %697 = vmatprep.mubr.f32.mxu0 0.0
    %698 = vmatmul.mubr.f32.gmra.mrb[0].mxu0 %v574
    %v699 = vpop.f32.mrb[0].mxu0
    %v700 = vadd.f32 0.0, %v699
    %v701 = vpop.f32.mrb[0].mxu0
    %702 = vmatprep.mubr.f32.mxu0 0.0
    %703 = vmatmul.mubr.f32.gmra.mrb[0].mxu0 %v577
    %v704 = vpop.f32.mrb[0].mxu0
    %v705 = vadd.f32 0.0, %v704
    %v706 = vpop.f32.mrb[0].mxu0
    %707 = vmatprep.mubr.f32.mxu0 0.0
    %708 = vmatmul.mubr.f32.gmra.mrb[0].mxu0 %v580
    %v709 = vpop.f32.mrb[0].mxu0
    %v710 = vadd.f32 0.0, %v709
    %v711 = vpop.f32.mrb[0].mxu0
    %712 = vmatprep.mubr.f32.mxu0 0.0
    %713 = vmatmul.mubr.f32.gmra.mrb[0].mxu0 %v583
    %v714 = vpop.f32.mrb[0].mxu0
    %v715 = vadd.f32 0.0, %v714
    %v716 = vpop.f32.mrb[0].mxu0
    %717 = vmatprep.mubr.f32.mxu0 0.0
    %718 = vmatmul.mubr.f32.gmra.mrb[0].mxu0 %v586
    %v719 = vpop.f32.mrb[0].mxu0
    %v720 = vadd.f32 0.0, %v719
    %v721 = vpop.f32.mrb[0].mxu0
    %722 = vmatprep.mubr.f32.mxu0 0.0
    %723 = vmatmul.mubr.f32.gmra.mrb[0].mxu0 %v589
    %v724 = vpop.f32.mrb[0].mxu0
    %v725 = vadd.f32 0.0, %v724
    %v726 = vpop.f32.mrb[0].mxu0
    %727 = vmatprep.mubr.f32.mxu0 0.0
    %728 = vmatmul.mubr.f32.gmra.mrb[0].mxu0 %v592
    %v729 = vpop.f32.mrb[0].mxu0
    %v730 = vadd.f32 0.0, %v729
    %v731 = vpop.f32.mrb[0].mxu0
    %732 = vmatprep.mubr.f32.mxu0 0.0
    %733 = vmatmul.mubr.f32.gmra.mrb[0].mxu0 %v595
    %v734 = vpop.f32.mrb[0].mxu0
    %v735 = vadd.f32 0.0, %v734
    %v736 = vpop.f32.mrb[0].mxu0
    %737 = vmatprep.mubr.f32.mxu0 0.0
    %738 = vmatmul.mubr.f32.gmra.mrb[0].mxu0 %v598
    %v739 = vpop.f32.mrb[0].mxu0
    %v740 = vadd.f32 0.0, %v739
    %v741 = vpop.f32.mrb[0].mxu0
    %742 = vmatprep.mubr.f32.mxu0 0.0
    %743 = vmatmul.mubr.f32.gmra.mrb[0].mxu0 %v601
    %v744 = vpop.f32.mrb[0].mxu0
    %v745 = vadd.f32 0.0, %v744
    %v746 = vpop.f32.mrb[0].mxu0
    %747 = vdwg.mxu0
    %v748 = vpack.c.bf16 %v675, %v670
    %v749 = vpack.c.bf16 %v685, %v680
    %v750 = vpack.c.bf16 %v695, %v690
    %v751 = vpack.c.bf16 %v705, %v700
    %v752 = vpack.c.bf16 %v715, %v710
    %v753 = vpack.c.bf16 %v725, %v720
    %v754 = vpack.c.bf16 %v735, %v730
    %v755 = vpack.c.bf16 %v745, %v740
    %v764 = vunpack.c.l.b16 %v748
    %v765 = vunpack.c.h.b16 %v748
    %v766 = vunpack.c.l.b16 %v749
    %v767 = vunpack.c.h.b16 %v749
    %v768 = vunpack.c.l.b16 %v750
    %v769 = vunpack.c.h.b16 %v750
    %v770 = vunpack.c.l.b16 %v751
    %v771 = vunpack.c.h.b16 %v751
    %v772 = vunpack.c.l.b16 %v752
    %v773 = vunpack.c.h.b16 %v752
    %v774 = vunpack.c.l.b16 %v753
    %v775 = vunpack.c.h.b16 %v753
    %v776 = vunpack.c.l.b16 %v754
    %v777 = vunpack.c.h.b16 %v754
    %v778 = vunpack.c.l.b16 %v755
    %v779 = vunpack.c.h.b16 %v755
    %v780 = vpack.c.b16 %v764, %v764
    %v781 = vpack.c.b16 %v765, %v765
    %v782 = vpack.c.b16 %v766, %v766
    %v783 = vpack.c.b16 %v767, %v767
    %v784 = vpack.c.b16 %v768, %v768
    %v785 = vpack.c.b16 %v769, %v769
    %v786 = vpack.c.b16 %v770, %v770
    %v787 = vpack.c.b16 %v771, %v771
    %v788 = vpack.c.b16 %v772, %v772
    %v789 = vpack.c.b16 %v773, %v773
    %v790 = vpack.c.b16 %v774, %v774
    %v791 = vpack.c.b16 %v775, %v775
    %v792 = vpack.c.b16 %v776, %v776
    %v793 = vpack.c.b16 %v777, %v777
    %v794 = vpack.c.b16 %v778, %v778
    %v795 = vpack.c.b16 %v779, %v779
    %vm812 = vcmask 11264
    %813 = vst.msk [vmem:[%s5] sm:$0xf] %vm812, %v780
    %814 = vst.msk [vmem:[%s5 + $0x4] sm:$0xf] %vm812, %v781
    %815 = vst.msk [vmem:[%s5 + $0x8] sm:$0xf] %vm812, %v782
    %816 = vst.msk [vmem:[%s5 + $0xc] sm:$0xf] %vm812, %v783
    %817 = vst.msk [vmem:[%s5 + $0x10] sm:$0xf] %vm812, %v784
    %818 = vst.msk [vmem:[%s5 + $0x14] sm:$0xf] %vm812, %v785
    %819 = vst.msk [vmem:[%s5 + $0x18] sm:$0xf] %vm812, %v786
    %820 = vst.msk [vmem:[%s5 + $0x1c] sm:$0xf] %vm812, %v787
    %821 = vst.msk [vmem:[%s5 + $0x20] sm:$0xf] %vm812, %v788
    %822 = vst.msk [vmem:[%s5 + $0x24] sm:$0xf] %vm812, %v789
    %823 = vst.msk [vmem:[%s5 + $0x28] sm:$0xf] %vm812, %v790
    %824 = vst.msk [vmem:[%s5 + $0x2c] sm:$0xf] %vm812, %v791
    %825 = vst.msk [vmem:[%s5 + $0x30] sm:$0xf] %vm812, %v792
    %826 = vst.msk [vmem:[%s5 + $0x34] sm:$0xf] %vm812, %v793
    %827 = vst.msk [vmem:[%s5 + $0x38] sm:$0xf] %vm812, %v794
    %828 = vst.msk [vmem:[%s5 + $0x3c] sm:$0xf] %vm812, %v795
  $region29: #{gcn_net_forward.2} parent=0 // pred_fallthru
    _
  // Predicated region
  $region30: #{gcn_net_forward.2} parent=0 // pred_check
    _
  $region31: #{gcn_net_forward.2} parent=0 // pred_check_branch
    %830 = sbr.rel (0) target = $region33
  $region32: #{gcn_net_forward.2} parent=0 // pred_region
    _
  $region33: #{gcn_net_forward.2} parent=0 // pred_fallthru
    _
  // Predicated region
  $region34: #{gcn_net_forward.2} parent=0 // pred_check
    _
  $region35: #{gcn_net_forward.2} parent=0 // pred_check_branch
    %832 = sbr.rel (0) target = $region37
  $region36: #{gcn_net_forward.2} parent=0 // pred_region
    _
  $region37: #{gcn_net_forward.2} parent=0 // pred_fallthru
    _

</llo_original>
